<compile_context>
chip_gen: v5e
topology: v5e:2x2
jax: 0.10.0
libtpu: 0.0.40
codegen_flags: <defaults>
</compile_context>

<pallas_src>
import functools

import jax
import jax.numpy as jnp
import numpy as np
from jax.experimental import pallas as pl
from jax.experimental.pallas import tpu as pltpu

N_MELS = 40
SAMPLE_RATE = 44100
N_FFT = 4096
MEL_PAD = 128            # lane-dense (128-wide) mel axis inside the kernel
_MiB = 1024 * 1024


def _cdiv(a, b):
    return -(-a // b)


def create_fb_matrix(n_freqs, f_min, f_max, n_mels, sample_rate):
    """Deterministic re-implementation of torchaudio.functional.create_fb_matrix
    (HTK mel scale, no normalization)."""
    all_freqs = np.linspace(0.0, sample_rate // 2, n_freqs)

    def hz_to_mel(f):
        return 2595.0 * np.log10(1.0 + f / 700.0)

    def mel_to_hz(m):
        return 700.0 * (10.0 ** (m / 2595.0) - 1.0)

    m_min = hz_to_mel(f_min)
    m_max = hz_to_mel(f_max)
    m_pts = np.linspace(m_min, m_max, n_mels + 2)
    f_pts = mel_to_hz(m_pts)
    f_diff = f_pts[1:] - f_pts[:-1]                       # (n_mels + 1,)
    slopes = f_pts[None, :] - all_freqs[:, None]          # (n_freqs, n_mels + 2)
    down_slopes = (-1.0 * slopes[:, :-2]) / f_diff[:-1]   # (n_freqs, n_mels)
    up_slopes = slopes[:, 2:] / f_diff[1:]                # (n_freqs, n_mels)
    fb = np.maximum(0.0, np.minimum(down_slopes, up_slopes))
    return fb.astype(np.float32)


# ---------------------------------------------------------------------------
# Kernel
# ---------------------------------------------------------------------------
def _mel_kernel(x_ref, fb_ref, o_ref, *, power):
    # x_ref : (s_tile, C, d2, 2*d3)  raw STFT, lanes interleaved [re0, im0, re1, ...]
    # fb_ref: (2*d3, 128)            row 2k+1 = fb[k, :]/C, row 2k = 0
    # o_ref : (s_tile, d2, 128)
    s_tile, n_ch, d2, k2 = x_ref.shape
    n_out = fb_ref.shape[-1]

    msum = None
    for c in range(n_ch):                            # static unroll; C is small
        v = x_ref[:, c, :, :]                        # (s_tile, d2, 2*d3)
        sq = v * v
        # Adjacent-lane pair sum (jnp.roll semantics: rolled[i] = sq[i-1]):
        # odd lane 2k+1 holds re_k^2 + im_k^2; even lanes hold cross-bin junk
        # that fb's zero even rows annihilate in the matmul.
        pair = sq + pltpu.roll(sq, shift=1, axis=sq.ndim - 1)   # XLU slot
        if power == 1:
            mag = jnp.sqrt(pair)                     # EUP slot, hidden under DMA
        elif power == 2:
            mag = pair
        else:
            mag = jnp.power(pair, 0.5 * power)
        msum = mag if msum is None else msum + mag   # channel sum (1/C is in fb)

    # Mel projection on the MXU in its natural orientation: contract the lane
    # axis (interleaved d3) of the LHS with fb.  M = s_tile * d2.
    lhs = msum.reshape(s_tile * d2, k2)
    res = jnp.dot(lhs, fb_ref[...], preferred_element_type=jnp.float32)
    o_ref[...] = res.reshape(s_tile, d2, n_out)      # full 128-wide rows -> unmasked vst


# ---------------------------------------------------------------------------
# Tiling policy
# ---------------------------------------------------------------------------
def _vmem_policy():
    """(block budget, vmem_limit cap, min grid steps) by TPU generation."""
    cap = None
    try:
        info = pltpu.get_tpu_info()
        cap = int(getattr(info, "vmem_capacity_bytes", 0)) or None
    except Exception:
        cap = None
    if cap is None:
        cap = 64 * _MiB                       # conservative: assume v7x-sized VMEM
    if cap >= 96 * _MiB:                      # v5e / v6e: 128 MiB physical VMEM
        return 80 * _MiB, 100 * _MiB, 2       # big blocks, 1 TC -> >=2 steps to pipeline
    return 36 * _MiB, 48 * _MiB, 4            # v7x: 64 MiB VMEM, 2 TCs -> >=4 steps


def _pick_s_tile(S, C, d2, k2, *, budget_bytes, min_steps):
    """Largest per-step sample batch whose VMEM footprint (pipeline buffers +
    in-kernel temporaries) fits the budget, balanced so the grid has at least
    min(min_steps, S) steps (pipelining / v7x TensorCore sharding)."""
    def vmem(t):
        x_blk = t * C * d2 * k2 * 4           # interleaved STFT input block
        o_blk = t * d2 * MEL_PAD * 4
        fb_blk = k2 * MEL_PAD * 4
        pipeline = 2 * (x_blk + o_blk + fb_blk)          # double-buffered by Pallas
        ch_slice = t * d2 * k2 * 4                       # one channel slice
        temps = 4 * ch_slice + 2 * o_blk                 # v/sq/pair + msum + lhs/res
        return pipeline + temps

    t_max = 1
    for t in range(1, S + 1):                 # vmem(t) is monotone in t
        if vmem(t) <= budget_bytes:
            t_max = t
        else:
            break
    steps = max(min(min_steps, S), _cdiv(S, t_max))
    s_tile = _cdiv(S, steps)
    return s_tile, vmem(s_tile)


# ---------------------------------------------------------------------------
# Wrapper
# ---------------------------------------------------------------------------
def mel_spectrogram(x, fb, *, power=1):
    """x: (S, C, d2, d3, 2) float.  fb: (>=d3, >=40).  Returns (d3, S, 1, d2) f32."""
    S, C, d2, d3, two = x.shape
    assert two == 2 and N_MELS <= d3 <= fb.shape[0]
    k2 = 2 * d3

    # Free collapse of the trailing complex axis: lanes are [re0, im0, re1, ...].
    # No power spectrum is materialized in HBM; the kernel reads the raw STFT once.
    xf = x.astype(jnp.float32).reshape(S, C, d2, k2)

    # fb: slice to d3 rows, fold the 1/C channel mean, zero-pad mel 40 -> 128
    # (lane-dense output), then interleave so weights sit on odd rows only.
    fb_k = fb[:d3, :N_MELS].astype(jnp.float32) * (1.0 / C)
    fb_k = jnp.pad(fb_k, ((0, 0), (0, MEL_PAD - N_MELS)))            # (d3, 128)
    fb_int = jnp.stack([jnp.zeros_like(fb_k), fb_k], axis=1)          # (d3, 2, 128)
    fb_int = fb_int.reshape(k2, MEL_PAD)                              # (2*d3, 128)

    budget, limit_cap, min_steps = _vmem_policy()
    s_tile, blk_bytes = _pick_s_tile(S, C, d2, k2,
                                     budget_bytes=budget, min_steps=min_steps)
    grid = _cdiv(S, s_tile)
    vmem_limit = int(max(32 * _MiB, min(blk_bytes + 12 * _MiB, limit_cap)))
    if blk_bytes + 8 * _MiB > vmem_limit:      # degenerate shapes: keep headroom anyway
        vmem_limit = int(blk_bytes + 8 * _MiB)

    kernel = functools.partial(_mel_kernel, power=power)
    out = pl.pallas_call(
        kernel,
        out_shape=jax.ShapeDtypeStruct((S, d2, MEL_PAD), jnp.float32),
        grid=(grid,),
        in_specs=[
            pl.BlockSpec((s_tile, C, d2, k2), lambda s: (s, 0, 0, 0)),
            # fb is constant across the grid (constant index_map -> fetched once).
            pl.BlockSpec((k2, MEL_PAD), lambda s: (0, 0)),
        ],
        out_specs=pl.BlockSpec((s_tile, d2, MEL_PAD), lambda s: (s, 0, 0)),
        compiler_params=pltpu.CompilerParams(
            dimension_semantics=("parallel",),
            vmem_limit_bytes=vmem_limit),
    )(xf, fb_int)                                                     # (S, d2, 128)

    # Tiny post-kernel glue on the small mel result: slice the 40 real mel
    # columns (cols 40..127 are exact zeros), then reshape / zero-pad / permute
    # exactly as the torch module does.
    mel = out[:, :, :N_MELS]                      # (S, d2, 40)
    mel = jnp.transpose(mel, (0, 2, 1))[:, None]  # (S, 1, 40, d2)  mono keepdim
    mel = jnp.pad(mel, ((0, 0), (0, 0), (0, d3 - N_MELS), (0, 0)))
    mel = jnp.transpose(mel, (2, 0, 1, 3))        # (d3, S, 1, d2)
    return mel


def mel_spectrogram_ref(x, fb, *, power=1):
    """Pure-JAX reference replicating the torch forward line by line."""
    x = jnp.swapaxes(x, 2, 3)                           # transpose(2, 3)
    s = jnp.power(jnp.sum(x ** 2, axis=-1), power / 2.0)
    s = jnp.mean(s, axis=1, keepdims=True)              # mono
    shape = s.shape
    s = s.reshape(-1, shape[-2], shape[-1])
    n_freqs = s.shape[1]
    mel = jnp.matmul(jnp.swapaxes(s, 1, 2), fb[:n_freqs, :N_MELS])
    mel = jnp.swapaxes(mel, 1, 2)
    mel = mel.reshape(shape[:-2] + mel.shape[-2:])
    mel = jnp.pad(mel, ((0, 0), (0, 0), (0, n_freqs - N_MELS), (0, 0)))
    mel = jnp.transpose(mel, (2, 0, 1, 3))
    return mel


if __name__ == "__main__":
    key = jax.random.PRNGKey(0)
    S, C, d2, d3 = 2, 4, 16, 64          # small shapes; 40 <= d3 <= 2049
    x = jax.random.normal(key, (S, C, d2, d3, 2), dtype=jnp.float32)

    fb = jnp.asarray(create_fb_matrix(
        n_freqs=N_FFT // 2 + 1, f_min=0.0, f_max=SAMPLE_RATE // 2,
        n_mels=N_MELS, sample_rate=SAMPLE_RATE))         # (2049, 40)

    mel_fn = jax.jit(functools.partial(mel_spectrogram, power=1))
    out = jax.block_until_ready(mel_fn(x, fb))

    ref = jax.block_until_ready(mel_spectrogram_ref(x, fb, power=1))
    assert out.shape == (d3, S, 1, d2)
    np.testing.assert_allclose(np.asarray(out), np.asarray(ref), rtol=1e-5, atol=1e-5)

    print("KERNEL_OK")
</pallas_src>

<mosaic_0001>
module attributes {stable_mosaic.version = 11 : i64} {
  func.func @_mel_kernel(%arg0: i32, %arg1: memref<1x4x16x128xf32, #tpu.memory_space<vmem>>, %arg2: memref<128x128xf32, #tpu.memory_space<vmem>>, %arg3: memref<1x16x128xf32, #tpu.memory_space<vmem>>) attributes {dimension_semantics = [#tpu.dimension_semantics<parallel>], iteration_bounds = array<i64: 2>, scalar_prefetch = 0 : i64, scratch_operands = 0 : i64, tpu.core_type = #tpu.core_type<tc>, window_params = [{transform_indices = @transform_0, window_bounds = array<i64: 1, 4, 16, 128>}, {pipeline_mode = #tpu.pipeline_mode<synchronous>, transform_indices = @transform_1, window_bounds = array<i64: 128, 128>}, {transform_indices = @transform_2, window_bounds = array<i64: 1, 16, 128>}]} {
    %c0 = arith.constant 0 : index
    %c0_0 = arith.constant 0 : index
    %c0_1 = arith.constant 0 : index
    %c0_2 = arith.constant 0 : index
    %0 = vector.load %arg1[%c0, %c0_0, %c0_1, %c0_2] : memref<1x4x16x128xf32, #tpu.memory_space<vmem>>, vector<1x1x16x128xf32>
    %1 = vector.shape_cast %0 : vector<1x1x16x128xf32> to vector<1x16x128xf32>
    %2 = arith.mulf %1, %1 : vector<1x16x128xf32>
    %c1_i32 = arith.constant 1 : i32
    %3 = tpu.dynamic_rotate %2 by %c1_i32 dim 2 : vector<1x16x128xf32>, i32 -> vector<1x16x128xf32>
    %4 = arith.addf %2, %3 : vector<1x16x128xf32>
    %5 = math.sqrt %4 : vector<1x16x128xf32>
    %c0_3 = arith.constant 0 : index
    %c1 = arith.constant 1 : index
    %c0_4 = arith.constant 0 : index
    %c0_5 = arith.constant 0 : index
    %6 = vector.load %arg1[%c0_3, %c1, %c0_4, %c0_5] : memref<1x4x16x128xf32, #tpu.memory_space<vmem>>, vector<1x1x16x128xf32>
    %7 = vector.shape_cast %6 : vector<1x1x16x128xf32> to vector<1x16x128xf32>
    %8 = arith.mulf %7, %7 : vector<1x16x128xf32>
    %c1_i32_6 = arith.constant 1 : i32
    %9 = tpu.dynamic_rotate %8 by %c1_i32_6 dim 2 : vector<1x16x128xf32>, i32 -> vector<1x16x128xf32>
    %10 = arith.addf %8, %9 : vector<1x16x128xf32>
    %11 = math.sqrt %10 : vector<1x16x128xf32>
    %12 = arith.addf %5, %11 : vector<1x16x128xf32>
    %c0_7 = arith.constant 0 : index
    %c2 = arith.constant 2 : index
    %c0_8 = arith.constant 0 : index
    %c0_9 = arith.constant 0 : index
    %13 = vector.load %arg1[%c0_7, %c2, %c0_8, %c0_9] : memref<1x4x16x128xf32, #tpu.memory_space<vmem>>, vector<1x1x16x128xf32>
    %14 = vector.shape_cast %13 : vector<1x1x16x128xf32> to vector<1x16x128xf32>
    %15 = arith.mulf %14, %14 : vector<1x16x128xf32>
    %c1_i32_10 = arith.constant 1 : i32
    %16 = tpu.dynamic_rotate %15 by %c1_i32_10 dim 2 : vector<1x16x128xf32>, i32 -> vector<1x16x128xf32>
    %17 = arith.addf %15, %16 : vector<1x16x128xf32>
    %18 = math.sqrt %17 : vector<1x16x128xf32>
    %19 = arith.addf %12, %18 : vector<1x16x128xf32>
    %c0_11 = arith.constant 0 : index
    %c3 = arith.constant 3 : index
    %c0_12 = arith.constant 0 : index
    %c0_13 = arith.constant 0 : index
    %20 = vector.load %arg1[%c0_11, %c3, %c0_12, %c0_13] : memref<1x4x16x128xf32, #tpu.memory_space<vmem>>, vector<1x1x16x128xf32>
    %21 = vector.shape_cast %20 : vector<1x1x16x128xf32> to vector<1x16x128xf32>
    %22 = arith.mulf %21, %21 : vector<1x16x128xf32>
    %c1_i32_14 = arith.constant 1 : i32
    %23 = tpu.dynamic_rotate %22 by %c1_i32_14 dim 2 : vector<1x16x128xf32>, i32 -> vector<1x16x128xf32>
    %24 = arith.addf %22, %23 : vector<1x16x128xf32>
    %25 = math.sqrt %24 : vector<1x16x128xf32>
    %26 = arith.addf %19, %25 : vector<1x16x128xf32>
    %27 = vector.shape_cast %26 : vector<1x16x128xf32> to vector<16x128xf32>
    %c0_15 = arith.constant 0 : index
    %c0_16 = arith.constant 0 : index
    %28 = vector.load %arg2[%c0_15, %c0_16] : memref<128x128xf32, #tpu.memory_space<vmem>>, vector<128x128xf32>
    %cst = arith.constant dense<0.000000e+00> : vector<16x128xf32>
    %29 = tpu.matmul %27, %28, %cst {dimension_numbers = #tpu.dot_dimension_numbers<[1], [0], [0], [1], [0, 0, 1, 1], [], []>} : vector<16x128xf32>, vector<128x128xf32>, vector<16x128xf32> -> vector<16x128xf32>
    %30 = vector.shape_cast %29 : vector<16x128xf32> to vector<1x16x128xf32>
    %c0_17 = arith.constant 0 : index
    %c0_18 = arith.constant 0 : index
    %c0_19 = arith.constant 0 : index
    %31 = vector.load %arg3[%c0_17, %c0_18, %c0_19] : memref<1x16x128xf32, #tpu.memory_space<vmem>>, vector<1x16x128xf32>
    tpu.vector_store %arg3[%c0_17, %c0_18, %c0_19], %30 {strides = array<i32>} : memref<1x16x128xf32, #tpu.memory_space<vmem>>, vector<1x16x128xf32>,
    return
  }
  func.func @transform_0(%arg0: i32) -> (i32, i32, i32, i32) {
    %c0_i32 = arith.constant 0 : i32
    %c0_i32_0 = arith.constant 0 : i32
    %c0_i32_1 = arith.constant 0 : i32
    %c0_i32_2 = arith.constant 0 : i32
    return %arg0, %c0_i32, %c0_i32_0, %c0_i32_1 : i32, i32, i32, i32
  }
  func.func @transform_1(%arg0: i32) -> (i32, i32) {
    %c0_i32 = arith.constant 0 : i32
    %c0_i32_0 = arith.constant 0 : i32
    %c0_i32_1 = arith.constant 0 : i32
    return %c0_i32, %c0_i32_0 : i32, i32
  }
  func.func @transform_2(%arg0: i32) -> (i32, i32, i32) {
    %c0_i32 = arith.constant 0 : i32
    %c0_i32_0 = arith.constant 0 : i32
    %c0_i32_1 = arith.constant 0 : i32
    return %arg0, %c0_i32, %c0_i32_0 : i32, i32, i32
  }
}

</mosaic_0001>

<llo_original>
// kernel: mel_spectrogram.1
$region0: #{mel_spectrogram.1}
  #allocation0 [shape = 'u32[]', space=smem, size = 0x4, offset = 0x4, fixed_abs, tag = 'smem constant byte address 0x4 - core index']
  #allocation1 [shape = 'u32[72,128]{1,0:T(1,128)}', space=vmem, size = 0x9000, scoped, tag = 'internal scratch']
  %s0 = inlined_call_operand.vmem [shape: f32[2,4,16,128], index: 0, kind: input, shape index: {}]
  %s1 = inlined_call_operand.vmem [shape: f32[128,128], index: 1, kind: input, shape index: {}]
  %s2 = inlined_call_operand.vmem [shape: f32[2,16,128], index: 2, kind: output, shape index: {}]
  %s3 = sld [smem:[#allocation0]]
  $region41: #{mel_spectrogram.1} parent=0
    _
  %s5 = ssub.s32 1, %s3
  %s6 = scalar_select 0, %s5, %s3
  loop: start=0, step=1, limit=4
  $region2: #{mel_spectrogram.1} parent=0 // loop_pre_header
    _
  $region3: #{mel_spectrogram.1} parent=0 // loop_header
    %s8 = sphi 0, %s12
    %p9 = scmp.ge.s32.totalorder %s8, 4
    %s18 = sphi 0, %s20
    %s21 = sphi 0, %s18
    %s22 = sphi 0, %s21
    %s38 = sphi 0, %s22
    %s42 = sphi 0, %s42
    %s44 = sphi 0, %s42
    %s45 = sphi 0, %s44
    %s59 = sphi 0, %s45
    %s65 = sphi 0, %s67
    %s68 = sphi 0, %s65
    %s69 = sphi 0, %s68
    %s85 = sphi 0, %s69
  $region4: #{mel_spectrogram.1} parent=0 // loop_header_branch
    %11 = sbr.rel (%p9) target = $region8
  $region5: #{mel_spectrogram.1} parent=0 // loop_body
    %s13 = ssub.s32 %s8, 1
    %s14 = ssub.s32 %s8, 2
    %s15 = sadd.s32 %s8, 1
    %s16 = ssub.s32 %s8, %s15
    %p17 = scmp.eq.s32.totalorder %s16, 0
    %s19 = sadd.s32 %s18, 1
    %s20 = scalar_select %p17, %s18, %s19
    %p23 = pneg %p17
    %p24 = scmp.eq.s32.totalorder %s8, 1
    %p25 = por %p23, %p24
    %p26 = scmp.ne.s32.totalorder %s18, %s21
    %p27 = scmp.eq.s32.totalorder %s8, 0
    %p28 = por %p26, %p27
    %p29 = scmp.ne.s32.totalorder %s18, %s21
    %p30 = scmp.eq.s32.totalorder %s13, 1
    %p31 = por %p29, %p30
    %p32 = scmp.ne.s32.totalorder %s21, %s22
    %p33 = scmp.eq.s32.totalorder %s13, 0
    %p34 = por %p32, %p33
    %p35 = scmp.ne.s32.totalorder %s21, %s22
    %p36 = scmp.eq.s32.totalorder %s14, 1
    %p37 = por %p35, %p36
    %p39 = scmp.ne.s32.totalorder %s22, %s38
    %p40 = scmp.eq.s32.totalorder %s14, 0
    %p41 = por %p39, %p40
    %s43 = sadd.s32 %s42, 1
    %p46 = scmp.eq.s32.totalorder %s8, 1
    %p47 = scmp.ne.s32.totalorder %s42, %s44
    %p48 = scmp.eq.s32.totalorder %s8, 0
    %p49 = por %p47, %p48
    %p50 = scmp.ne.s32.totalorder %s42, %s44
    %p51 = scmp.eq.s32.totalorder %s13, 1
    %p52 = por %p50, %p51
    %p53 = scmp.ne.s32.totalorder %s44, %s45
    %p54 = scmp.eq.s32.totalorder %s13, 0
    %p55 = por %p53, %p54
    %p56 = scmp.ne.s32.totalorder %s44, %s45
    %p57 = scmp.eq.s32.totalorder %s14, 1
    %p58 = por %p56, %p57
    %p60 = scmp.ne.s32.totalorder %s45, %s59
    %p61 = scmp.eq.s32.totalorder %s14, 0
    %p62 = por %p60, %p61
    %s63 = ssub.s32 %s8, %s15
    %p64 = scmp.eq.s32.totalorder %s63, 0
    %s66 = sadd.s32 %s65, 1
    %s67 = scalar_select %p64, %s65, %s66
    %p70 = pneg %p64
    %p71 = scmp.eq.s32.totalorder %s8, 1
    %p72 = por %p70, %p71
    %p73 = scmp.ne.s32.totalorder %s65, %s68
    %p74 = scmp.eq.s32.totalorder %s8, 0
    %p75 = por %p73, %p74
    %p76 = scmp.ne.s32.totalorder %s65, %s68
    %p77 = scmp.eq.s32.totalorder %s13, 1
    %p78 = por %p76, %p77
    %p79 = scmp.ne.s32.totalorder %s68, %s69
    %p80 = scmp.eq.s32.totalorder %s13, 0
    %p81 = por %p79, %p80
    %p82 = scmp.ne.s32.totalorder %s68, %s69
    %p83 = scmp.eq.s32.totalorder %s14, 1
    %p84 = por %p82, %p83
    %p86 = scmp.ne.s32.totalorder %s69, %s85
    %p87 = scmp.eq.s32.totalorder %s14, 0
    %p88 = por %p86, %p87
    %p89 = scmp.le.s32.totalorder 1, %s8
    %p90 = scmp.lt.s32.totalorder %s8, 3
    %p91 = pnand %p89, %p90
    %p92 = pneg %p91
    // Predicated region
    $region9: #{mel_spectrogram.1} parent=5 // pred_check
      _
    $region10: #{mel_spectrogram.1} parent=5 // pred_check_branch
      %94 = sbr.rel (%p91) target = $region12
    $region11: #{mel_spectrogram.1} parent=5 // pred_region
      %s95 = ssub.s32 %s8, 1
      // Predicated region
      $region13: #{mel_spectrogram.1} parent=11 // pred_check
        %p96 = pneg %p55
      $region14: #{mel_spectrogram.1} parent=11 // pred_check_branch
        %98 = sbr.rel (%p96) target = $region16
      $region15: #{mel_spectrogram.1} parent=11 // pred_region
        _
      $region16: #{mel_spectrogram.1} parent=11 // pred_fallthru
        _
    $region12: #{mel_spectrogram.1} parent=5 // pred_fallthru
      _
    %p99 = scmp.lt.s32.totalorder %s8, 2
    // Predicated region
    $region17: #{mel_spectrogram.1} parent=5 // pred_check
      %p100 = pneg %p99
    $region18: #{mel_spectrogram.1} parent=5 // pred_check_branch
      %102 = sbr.rel (%p100) target = $region20
    $region19: #{mel_spectrogram.1} parent=5 // pred_region
      // Predicated region
      $region21: #{mel_spectrogram.1} parent=19 // pred_check
        %p103 = pneg %p28
      $region22: #{mel_spectrogram.1} parent=19 // pred_check_branch
        %105 = sbr.rel (%p103) target = $region24
      $region23: #{mel_spectrogram.1} parent=19 // pred_region
        %p106 = scmp.lt.s32.totalorder %s8, 1
        %s107 = scalar_select %p106, %s8, 1
        %s108 = smul.addr %s107, 8
        %s109 = smul.addr %s108, 8
        %s110 = scalar_lea.vmem %s0, %s109
      $region24: #{mel_spectrogram.1} parent=19 // pred_fallthru
        _
    $region20: #{mel_spectrogram.1} parent=5 // pred_fallthru
      _
    %p111 = scmp.le.s32.totalorder 1, %s8
    %p112 = scmp.lt.s32.totalorder %s8, 3
    %p113 = pnand %p111, %p112
    %p114 = pneg %p113
    // Predicated region
    $region25: #{mel_spectrogram.1} parent=5 // pred_check
      _
    $region26: #{mel_spectrogram.1} parent=5 // pred_check_branch
      %116 = sbr.rel (%p113) target = $region28
    $region27: #{mel_spectrogram.1} parent=5 // pred_region
      %s117 = ssub.s32 %s8, 1
      %p118 = scmp.lt.s32.totalorder %s13, 1
      %s119 = scalar_select %p118, %s13, 1
      %s120 = smul.addr %s119, 8
      %s121 = smul.addr %s120, 8
      %s122 = scalar_lea.vmem %s0, %s121
      %p123 = pneg %p34
      %p124 = pneg %p31
      %p125 = pneg %p55
      %p126 = pneg %p52
      %p127 = pneg %p81
      %p128 = pneg %p78
      %p129 = scmp.lt.s32.totalorder %s13, 1
      %s130 = scalar_select %p129, %s13, 1
      %s131 = smul.addr %s130, 2
      %s132 = smul.addr %s131, 8
      %s133 = scalar_lea.vmem %s2, %s132
      %p134 = scmp.lt.s32.totalorder %s13, 1
      %s135 = scalar_select %p134, %s13, 1
      %s136 = smul.addr %s135, 8
      %s137 = smul.addr %s136, 8
      %s138 = scalar_lea.vmem %s0, %s137
      %p139 = scmp.lt.s32.totalorder %s13, 1
      %s140 = scalar_select %p139, %s13, 1
      %s141 = smul.addr %s140, 2
      %s142 = smul.addr %s141, 8
      %s143 = scalar_lea.vmem %s2, %s142
      %v144 = vld [vmem:[%s138] sm:$0xff]
      %v145 = vld [vmem:[%s138 + $0x8] sm:$0xff]
      %v146 = vmul.f32 %v144, %v144
      %v147 = vmul.f32 %v145, %v145
      %148 = vrot.lane.b32.xlu0 %v146, 1
      %v149 = vpop.permute.xlu0 %148
      %150 = vrot.lane.b32.xlu0 %v147, 1
      %v151 = vpop.permute.xlu0 %150
      %v152 = vadd.f32 %v146, %v149
      %v153 = vadd.f32 %v147, %v151
      %v154 = vrsqrt.pop %v152
      %v155 = vmul.f32 %v154, %v152
      %v156 = vmul.f32 %v155, %v154
      %v157 = vmul.f32 0.5, %v156
      %v158 = vsub.f32 1.5, %v157
      %v159 = vmul.f32 %v154, %v158
      %v160 = vmul.f32 %v152, %v159
      %vm161 = vcmp.eq.f32.partialorder %v152, inf
      %v162 = vsel %vm161, %v152, %v160
      %vm163 = vcmp.eq.f32.partialorder %v152, 0.0
      %v164 = vand.u32 %v152, 2147483648
      %v165 = vsel %vm163, %v164, %v162
      %v166 = vrsqrt.pop %v153
      %v167 = vmul.f32 %v166, %v153
      %v168 = vmul.f32 %v167, %v166
      %v169 = vmul.f32 0.5, %v168
      %v170 = vsub.f32 1.5, %v169
      %v171 = vmul.f32 %v166, %v170
      %v172 = vmul.f32 %v153, %v171
      %vm173 = vcmp.eq.f32.partialorder %v153, inf
      %v174 = vsel %vm173, %v153, %v172
      %vm175 = vcmp.eq.f32.partialorder %v153, 0.0
      %v176 = vand.u32 %v153, 2147483648
      %v177 = vsel %vm175, %v176, %v174
      %s178 = scalar_lea.vmem %s138, 16
      %v179 = vld [vmem:[%s178] sm:$0xff]
      %v180 = vld [vmem:[%s178 + $0x8] sm:$0xff]
      %v181 = vmul.f32 %v179, %v179
      %v182 = vmul.f32 %v180, %v180
      %183 = vrot.lane.b32.xlu0 %v181, 1
      %v184 = vpop.permute.xlu0 %183
      %185 = vrot.lane.b32.xlu0 %v182, 1
      %v186 = vpop.permute.xlu0 %185
      %v187 = vadd.f32 %v181, %v184
      %v188 = vadd.f32 %v182, %v186
      %v189 = vrsqrt.pop %v187
      %v190 = vmul.f32 %v189, %v187
      %v191 = vmul.f32 %v190, %v189
      %v192 = vmul.f32 0.5, %v191
      %v193 = vsub.f32 1.5, %v192
      %v194 = vmul.f32 %v189, %v193
      %v195 = vmul.f32 %v187, %v194
      %vm196 = vcmp.eq.f32.partialorder %v187, inf
      %v197 = vsel %vm196, %v187, %v195
      %vm198 = vcmp.eq.f32.partialorder %v187, 0.0
      %v199 = vand.u32 %v187, 2147483648
      %v200 = vsel %vm198, %v199, %v197
      %v201 = vrsqrt.pop %v188
      %v202 = vmul.f32 %v201, %v188
      %v203 = vmul.f32 %v202, %v201
      %v204 = vmul.f32 0.5, %v203
      %v205 = vsub.f32 1.5, %v204
      %v206 = vmul.f32 %v201, %v205
      %v207 = vmul.f32 %v188, %v206
      %vm208 = vcmp.eq.f32.partialorder %v188, inf
      %v209 = vsel %vm208, %v188, %v207
      %vm210 = vcmp.eq.f32.partialorder %v188, 0.0
      %v211 = vand.u32 %v188, 2147483648
      %v212 = vsel %vm210, %v211, %v209
      %v213 = vadd.f32 %v165, %v200
      %v214 = vadd.f32 %v177, %v212
      %s215 = scalar_lea.vmem %s138, 32
      %v216 = vld [vmem:[%s215] sm:$0xff]
      %v217 = vld [vmem:[%s215 + $0x8] sm:$0xff]
      %v218 = vmul.f32 %v216, %v216
      %v219 = vmul.f32 %v217, %v217
      %220 = vrot.lane.b32.xlu0 %v218, 1
      %v221 = vpop.permute.xlu0 %220
      %222 = vrot.lane.b32.xlu0 %v219, 1
      %v223 = vpop.permute.xlu0 %222
      %v224 = vadd.f32 %v218, %v221
      %v225 = vadd.f32 %v219, %v223
      %v226 = vrsqrt.pop %v224
      %v227 = vmul.f32 %v226, %v224
      %v228 = vmul.f32 %v227, %v226
      %v229 = vmul.f32 0.5, %v228
      %v230 = vsub.f32 1.5, %v229
      %v231 = vmul.f32 %v226, %v230
      %v232 = vmul.f32 %v224, %v231
      %vm233 = vcmp.eq.f32.partialorder %v224, inf
      %v234 = vsel %vm233, %v224, %v232
      %vm235 = vcmp.eq.f32.partialorder %v224, 0.0
      %v236 = vand.u32 %v224, 2147483648
      %v237 = vsel %vm235, %v236, %v234
      %v238 = vrsqrt.pop %v225
      %v239 = vmul.f32 %v238, %v225
      %v240 = vmul.f32 %v239, %v238
      %v241 = vmul.f32 0.5, %v240
      %v242 = vsub.f32 1.5, %v241
      %v243 = vmul.f32 %v238, %v242
      %v244 = vmul.f32 %v225, %v243
      %vm245 = vcmp.eq.f32.partialorder %v225, inf
      %v246 = vsel %vm245, %v225, %v244
      %vm247 = vcmp.eq.f32.partialorder %v225, 0.0
      %v248 = vand.u32 %v225, 2147483648
      %v249 = vsel %vm247, %v248, %v246
      %v250 = vadd.f32 %v213, %v237
      %v251 = vadd.f32 %v214, %v249
      %s252 = scalar_lea.vmem %s138, 48
      %v253 = vld [vmem:[%s252] sm:$0xff]
      %v254 = vld [vmem:[%s252 + $0x8] sm:$0xff]
      %v255 = vmul.f32 %v253, %v253
      %v256 = vmul.f32 %v254, %v254
      %257 = vrot.lane.b32.xlu0 %v255, 1
      %v258 = vpop.permute.xlu0 %257
      %259 = vrot.lane.b32.xlu0 %v256, 1
      %v260 = vpop.permute.xlu0 %259
      %v261 = vadd.f32 %v255, %v258
      %v262 = vadd.f32 %v256, %v260
      %v263 = vrsqrt.pop %v261
      %v264 = vmul.f32 %v263, %v261
      %v265 = vmul.f32 %v264, %v263
      %v266 = vmul.f32 0.5, %v265
      %v267 = vsub.f32 1.5, %v266
      %v268 = vmul.f32 %v263, %v267
      %v269 = vmul.f32 %v261, %v268
      %vm270 = vcmp.eq.f32.partialorder %v261, inf
      %v271 = vsel %vm270, %v261, %v269
      %vm272 = vcmp.eq.f32.partialorder %v261, 0.0
      %v273 = vand.u32 %v261, 2147483648
      %v274 = vsel %vm272, %v273, %v271
      %v275 = vrsqrt.pop %v262
      %v276 = vmul.f32 %v275, %v262
      %v277 = vmul.f32 %v276, %v275
      %v278 = vmul.f32 0.5, %v277
      %v279 = vsub.f32 1.5, %v278
      %v280 = vmul.f32 %v275, %v279
      %v281 = vmul.f32 %v262, %v280
      %vm282 = vcmp.eq.f32.partialorder %v262, inf
      %v283 = vsel %vm282, %v262, %v281
      %vm284 = vcmp.eq.f32.partialorder %v262, 0.0
      %v285 = vand.u32 %v262, 2147483648
      %v286 = vsel %vm284, %v285, %v283
      %v287 = vadd.f32 %v250, %v274
      %v288 = vadd.f32 %v251, %v286
      %v289 = vld [vmem:[%s1] sm:$0xff]
      %v290 = vld [vmem:[%s1 + $0x8] sm:$0xff]
      %v291 = vld [vmem:[%s1 + $0x10] sm:$0xff]
      %v292 = vld [vmem:[%s1 + $0x18] sm:$0xff]
      %v293 = vld [vmem:[%s1 + $0x20] sm:$0xff]
      %v294 = vld [vmem:[%s1 + $0x28] sm:$0xff]
      %v295 = vld [vmem:[%s1 + $0x30] sm:$0xff]
      %v296 = vld [vmem:[%s1 + $0x38] sm:$0xff]
      %v297 = vld [vmem:[%s1 + $0x40] sm:$0xff]
      %v298 = vld [vmem:[%s1 + $0x48] sm:$0xff]
      %v299 = vld [vmem:[%s1 + $0x50] sm:$0xff]
      %v300 = vld [vmem:[%s1 + $0x58] sm:$0xff]
      %v301 = vld [vmem:[%s1 + $0x60] sm:$0xff]
      %v302 = vld [vmem:[%s1 + $0x68] sm:$0xff]
      %v303 = vld [vmem:[%s1 + $0x70] sm:$0xff]
      %v304 = vld [vmem:[%s1 + $0x78] sm:$0xff]
      %305 = vmatpush.msra.mxu0 %v304
      %306 = vmatpush.msra.mxu0 %v303
      %307 = vmatpush.msra.mxu0 %v302
      %308 = vmatpush.msra.mxu0 %v301
      %309 = vmatpush.msra.mxu0 %v300
      %310 = vmatpush.msra.mxu0 %v299
      %311 = vmatpush.msra.mxu0 %v298
      %312 = vmatpush.msra.mxu0 %v297
      %313 = vmatpush.msra.mxu0 %v296
      %314 = vmatpush.msra.mxu0 %v295
      %315 = vmatpush.msra.mxu0 %v294
      %316 = vmatpush.msra.mxu0 %v293
      %317 = vmatpush.msra.mxu0 %v292
      %318 = vmatpush.msra.mxu0 %v291
      %319 = vmatpush.msra.mxu0 %v290
      %320 = vmatpush.msra.mxu0 %v289
      %321 = vmatmul.f32.gmra.mxu0 %v287
      %v322 = vpop.f32.mrf.mxu0
      %v323 = vadd.f32 0.0, %v322
      %324 = vmatmul.f32.gmra.mxu0 %v288
      %v325 = vpop.f32.mrf.mxu0
      %v326 = vadd.f32 0.0, %v325
      %327 = vdwg.mxu0
      %328 = vst [vmem:[%s143] sm:$0xff] %v323
      %329 = vst [vmem:[%s143 + $0x8] sm:$0xff] %v326
      %p330 = scmp.lt.s32.totalorder %s13, 1
      %s331 = scalar_select %p330, %s13, 1
      %s332 = smul.addr %s331, 2
      %s333 = smul.addr %s332, 8
      %s334 = scalar_lea.vmem %s2, %s333
      // Predicated region
      $region29: #{mel_spectrogram.1} parent=27 // pred_check
        %p335 = pneg %p78
      $region30: #{mel_spectrogram.1} parent=27 // pred_check_branch
        %337 = sbr.rel (%p335) target = $region32
      $region31: #{mel_spectrogram.1} parent=27 // pred_region
        _
      $region32: #{mel_spectrogram.1} parent=27 // pred_fallthru
        _
    $region28: #{mel_spectrogram.1} parent=5 // pred_fallthru
      _
    %p338 = scmp.le.s32.totalorder 2, %s8
    // Predicated region
    $region33: #{mel_spectrogram.1} parent=5 // pred_check
      %p339 = pneg %p338
    $region34: #{mel_spectrogram.1} parent=5 // pred_check_branch
      %341 = sbr.rel (%p339) target = $region36
    $region35: #{mel_spectrogram.1} parent=5 // pred_region
      %s342 = ssub.s32 %s8, 2
      // Predicated region
      $region37: #{mel_spectrogram.1} parent=35 // pred_check
        %p343 = pneg %p84
      $region38: #{mel_spectrogram.1} parent=35 // pred_check_branch
        %345 = sbr.rel (%p343) target = $region40
      $region39: #{mel_spectrogram.1} parent=35 // pred_region
        %p346 = scmp.lt.s32.totalorder %s14, 1
        %s347 = scalar_select %p346, %s14, 1
        %s348 = smul.addr %s347, 2
        %s349 = smul.addr %s348, 8
        %s350 = scalar_lea.vmem %s2, %s349
      $region40: #{mel_spectrogram.1} parent=35 // pred_fallthru
        _
    $region36: #{mel_spectrogram.1} parent=5 // pred_fallthru
      _
  $region6: #{mel_spectrogram.1} parent=0 // loop_footer
    %s12 = sadd.s32 1, %s8
  $region7: #{mel_spectrogram.1} parent=0 // loop_footer_branch
    %7 = sbr.rel target = $region3
  $region8: #{mel_spectrogram.1} parent=0 // loop_exit
    _

</llo_original>
